<compile_context>
chip_gen: v7x
topology: tpu7x:2x2x1
jax: 0.10.0
libtpu: 0.0.40
codegen_flags: <defaults>
</compile_context>

<pallas_src>
import functools

import jax
import jax.numpy as jnp
from jax.experimental import pallas as pl
from jax.experimental.pallas import tpu as pltpu


def _vmem_limit_bytes():
    # Raise the scoped-VMEM limit above the conservative defaults (16 MiB v5e /
    # 32 MiB v6e,v7x) while staying under physical capacity (128/128/64 MiB).
    try:
        return int(pltpu.get_tpu_info().vmem_capacity_bytes * 3 // 4)
    except Exception:
        return 48 * 1024 * 1024


# ----------------------------------------------------------------------------
# Fused SpatialGroupEnhance + ChannelGate kernel.
# One grid step = (one GroupNorm group of channels, one batch element).
#   x_ref  : (1, S, cpg, HW)  S = SGE groups inside this GN group, cpg = C // groups
#   w_ref  : (1, S, 1)        SGE per-group affine weight (f32)
#   b_ref  : (1, S, 1)        SGE per-group affine bias   (f32)
#   gw_ref : (1, S, cpg, 1)   GroupNorm per-channel weight (f32)
#   gb_ref : (1, S, cpg, 1)   GroupNorm per-channel bias   (f32)
# outputs:
#   o_ref  : (1, S, cpg, HW)  gated activations (x.dtype)
#   s_ref  : (1, S, cpg, 1)   sigmoid(channel_att_sum) (f32)  -> chan_wgt glue
# ----------------------------------------------------------------------------
def _sca_fused_kernel(x_ref, w_ref, b_ref, gw_ref, gb_ref, o_ref, s_ref,
                      *, inv_hwm1, inv_cgm1):
    x = x_ref[0]                                     # (S, cpg, HW), I/O dtype

    # ---- SpatialGroupEnhance: ChannelPool(max + mean) + spatial standardization ----
    # Statistics in f32; `xf` is transient (only feeds the pooling reduces).
    xf = x.astype(jnp.float32)
    xn = jnp.max(xf, axis=1) + jnp.mean(xf, axis=1)  # (S, HW)
    m = jnp.mean(xn, axis=1, keepdims=True)          # (S, 1)
    d = xn - m
    var = jnp.sum(d * d, axis=1, keepdims=True) * inv_hwm1      # unbiased (torch .std)
    t = d / (jnp.sqrt(var) + 1e-5) * w_ref[0] + b_ref[0]        # exact divide (EUP)
    sig = jax.nn.sigmoid(t)                                     # (S, HW) f32
    # Gated tile stays in VMEM in the I/O dtype (no full-tile f32 kept live).
    y = x * sig[:, None, :].astype(x.dtype)                     # (S, cpg, HW)

    # ---- ChannelGate: avg/max pool over HW, GroupNorm over this GN group ----
    yf = y.astype(jnp.float32)                       # transient, feeds pooling only
    avg = jnp.mean(yf, axis=2, keepdims=True)        # (S, cpg, 1) == F.avg_pool2d
    mx = jnp.max(yf, axis=2, keepdims=True)          # (S, cpg, 1) == F.max_pool2d
    gw = gw_ref[0]                                   # (S, cpg, 1) f32
    gb = gb_ref[0]

    def gnorm(v):                                    # GroupNorm over all channels of block
        mu = jnp.mean(jnp.mean(v, axis=1, keepdims=True), axis=0, keepdims=True)
        dv = v - mu
        ss = jnp.sum(jnp.sum(dv * dv, axis=1, keepdims=True), axis=0, keepdims=True)
        # unbiased variance (torch Tensor.var default); (var + eps) inside the sqrt
        return dv / jnp.sqrt(ss * inv_cgm1 + 1e-5) * gw + gb

    scale = jax.nn.sigmoid(gnorm(avg) + gnorm(mx))   # (S, cpg, 1) f32 = sigmoid(att_sum)
    o_ref[0] = (y * scale.astype(y.dtype)).astype(o_ref.dtype)
    s_ref[0] = scale.astype(s_ref.dtype)


def sca_attention(x, sge_weight, sge_bias, gn_weight, gn_bias, groups,
                  num_gn_groups=4):
    """Fused SpatialGroupEnhance(groups) -> ChannelGate(GroupNorm with 4 groups)."""
    B, C, H, W = x.shape
    NG = num_gn_groups
    assert C % groups == 0 and C % NG == 0
    # Fusion assumes SGE-group boundaries align with GroupNorm-group boundaries
    # (groups % 4 == 0); true for the module defaults (groups=64, gn_groups=4).
    assert groups % NG == 0
    S = groups // NG               # SGE groups per GroupNorm group
    cpg = C // groups              # channels per SGE group
    cg = C // NG                   # channels per GroupNorm group (= S * cpg)
    HW = H * W

    x4 = x.reshape(B * NG, S, cpg, HW)
    # Parameters stay float32 (no silent downcast; they are tiny).
    w = sge_weight.reshape(NG, S, 1).astype(jnp.float32)
    wb = sge_bias.reshape(NG, S, 1).astype(jnp.float32)
    gw = gn_weight.reshape(NG, S, cpg, 1).astype(jnp.float32)
    gb = gn_bias.reshape(NG, S, cpg, 1).astype(jnp.float32)

    kernel = functools.partial(_sca_fused_kernel,
                               inv_hwm1=1.0 / max(HW - 1, 1),
                               inv_cgm1=1.0 / max(cg - 1, 1))
    out, scale = pl.pallas_call(
        kernel,
        out_shape=(
            jax.ShapeDtypeStruct((B * NG, S, cpg, HW), x.dtype),
            jax.ShapeDtypeStruct((B * NG, S, cpg, 1), jnp.float32),
        ),
        # GN-group axis OUTER, batch INNER: the four parameter blocks depend only on
        # gi, so they stay VMEM-resident across the inner batch loop (no per-step DMAs).
        grid=(NG, B),
        in_specs=[
            pl.BlockSpec((1, S, cpg, HW), lambda gi, bi: (bi * NG + gi, 0, 0, 0)),
            pl.BlockSpec((1, S, 1), lambda gi, bi: (gi, 0, 0)),
            pl.BlockSpec((1, S, 1), lambda gi, bi: (gi, 0, 0)),
            pl.BlockSpec((1, S, cpg, 1), lambda gi, bi: (gi, 0, 0, 0)),
            pl.BlockSpec((1, S, cpg, 1), lambda gi, bi: (gi, 0, 0, 0)),
        ],
        out_specs=(
            pl.BlockSpec((1, S, cpg, HW), lambda gi, bi: (bi * NG + gi, 0, 0, 0)),
            pl.BlockSpec((1, S, cpg, 1), lambda gi, bi: (bi * NG + gi, 0, 0, 0)),
        ),
        compiler_params=pltpu.CompilerParams(
            dimension_semantics=("parallel", "parallel"),
            vmem_limit_bytes=_vmem_limit_bytes()),
    )(x4, w, wb, gw, gb)

    x_out = out.reshape(B, C, H, W)
    # channel_wt = mean over batch of sigmoid(channel_att_sum); tiny f32 (B,C) glue reduce.
    chan_wgt = jnp.mean(scale.reshape(B, C), axis=0)
    return x_out, chan_wgt


# ----------------------------------------------------------------------------
# Layer_4 kernel (lay_4=True branch).
# Grid = (group-block, batch).  Each step processes Gt SGE groups (block ~MB-scale so
# the fixed per-step overhead is amortized).  Batch is the innermost "arbitrary" axis
# so the per-group-block f32 batch-mean accumulator stays VMEM-resident across it
# (no second full-tensor HBM pass for torch's `mean(x, dim=0)` glue).
# ----------------------------------------------------------------------------
def _layer4_kernel(x_ref, w_ref, b_ref, o_ref, acc_ref, *, inv_batch):
    bi = pl.program_id(1)
    x = x_ref[0]                                     # (Gt, cpg, HW), I/O dtype
    xf = x.astype(jnp.float32)                       # transient: pooling stats only
    xn = jnp.max(xf, axis=1) + jnp.mean(xf, axis=1)  # (Gt, HW)  ChannelPool + sum
    t = xn * w_ref[0] + b_ref[0]                     # per-group affine, f32
    y = (x * jax.nn.sigmoid(t)[:, None, :].astype(x.dtype)).astype(o_ref.dtype)
    o_ref[0] = y

    contrib = y.astype(jnp.float32)                  # f32 accumulation (precision)

    @pl.when(bi == 0)
    def _init():
        acc_ref[0] = contrib

    @pl.when(bi > 0)
    def _accumulate():
        acc_ref[0] = acc_ref[0] + contrib

    @pl.when(bi == pl.num_programs(1) - 1)
    def _finalize():
        acc_ref[0] = jax.nn.sigmoid(acc_ref[0] * inv_batch)


def _pick_group_tile(G, bytes_per_group, target_bytes=4 << 20):
    """Largest divisor of G whose block stays under `target_bytes`; prefer >= 2 blocks
    along the parallel grid axis so both v7x TensorCores get work."""
    divisors = [d for d in range(1, G + 1) if G % d == 0]
    candidates = [d for d in divisors if d < G] if G > 1 else divisors
    fitting = [d for d in candidates if d * bytes_per_group <= target_bytes]
    return max(fitting) if fitting else min(candidates)


def layer_4(x, weight, bias, groups):
    B, C, H, W = x.shape
    G, cpg, HW = groups, C // groups, H * W
    itemsize = jnp.dtype(x.dtype).itemsize
    Gt = _pick_group_tile(G, cpg * HW * itemsize)    # SGE groups per grid step
    GB = G // Gt                                     # number of group blocks

    x5 = x.reshape(B * GB, Gt, cpg, HW)
    w = weight.reshape(GB, Gt, 1).astype(jnp.float32)
    bs = bias.reshape(GB, Gt, 1).astype(jnp.float32)

    kernel = functools.partial(_layer4_kernel, inv_batch=1.0 / B)
    out, acc = pl.pallas_call(
        kernel,
        out_shape=(
            jax.ShapeDtypeStruct((B * GB, Gt, cpg, HW), x.dtype),
            jax.ShapeDtypeStruct((GB, Gt, cpg, HW), jnp.float32),   # f32 accumulator
        ),
        grid=(GB, B),    # batch last: the acc block for a group block is revisited across batch
        in_specs=[
            pl.BlockSpec((1, Gt, cpg, HW), lambda gb, bi: (bi * GB + gb, 0, 0, 0)),
            pl.BlockSpec((1, Gt, 1), lambda gb, bi: (gb, 0, 0)),
            pl.BlockSpec((1, Gt, 1), lambda gb, bi: (gb, 0, 0)),
        ],
        out_specs=(
            pl.BlockSpec((1, Gt, cpg, HW), lambda gb, bi: (bi * GB + gb, 0, 0, 0)),
            pl.BlockSpec((1, Gt, cpg, HW), lambda gb, bi: (gb, 0, 0, 0)),
        ),
        compiler_params=pltpu.CompilerParams(
            dimension_semantics=("parallel", "arbitrary"),
            vmem_limit_bytes=_vmem_limit_bytes()),
    )(x5, w, bs)

    x_out = out.reshape(B, C, H, W)
    batch_mean = jnp.squeeze(acc.reshape(C, H, W))   # sigmoid(mean over batch), f32
    return x_out, batch_mean


# ----------------------------------------------------------------------------
# SCA forward + params (deterministic init mirroring the PyTorch __init__).
# ----------------------------------------------------------------------------
def make_sca_params(gate_channels, groups, lay_4):
    if lay_4:
        return {
            "l4_weight": jnp.zeros((1, groups, 1, 1), jnp.float32),
            "l4_bias": jnp.ones((1, groups, 1, 1), jnp.float32),
        }
    return {
        "sge_weight": jnp.zeros((1, groups, 1, 1), jnp.float32),
        "sge_bias": jnp.ones((1, groups, 1, 1), jnp.float32),
        "gn_weight": jnp.ones((1, gate_channels, 1, 1), jnp.float32),
        "gn_bias": jnp.zeros((1, gate_channels, 1, 1), jnp.float32),
    }


def sca_forward(x, params, groups, lay_4):
    if lay_4:
        return layer_4(x, params["l4_weight"], params["l4_bias"], groups)
    return sca_attention(x, params["sge_weight"], params["sge_bias"],
                         params["gn_weight"], params["gn_bias"], groups)


# ----------------------------------------------------------------------------
# Pure-JAX reference (mirrors the PyTorch module) for correctness checking.
# ----------------------------------------------------------------------------
def _sca_ref(x, params, groups, lay_4, num_gn_groups=4):
    B, C, H, W = x.shape
    HW = H * W
    cpg = C // groups
    xf = x.astype(jnp.float32)
    if lay_4:
        xg = xf.reshape(B, groups, cpg, HW)
        xn = jnp.max(xg, axis=2) + jnp.mean(xg, axis=2)                 # (B,G,HW)
        t = (xn * params["l4_weight"].reshape(1, groups, 1)
             + params["l4_bias"].reshape(1, groups, 1))
        x_out = (xg * jax.nn.sigmoid(t)[:, :, None, :]).reshape(B, C, H, W)
        batch_mean = jax.nn.sigmoid(jnp.squeeze(jnp.mean(x_out, axis=0)))
        return x_out, batch_mean
    # SpatialGroupEnhance
    xg = xf.reshape(B, groups, cpg, HW)
    xn = jnp.max(xg, axis=2) + jnp.mean(xg, axis=2)
    m = jnp.mean(xn, axis=2, keepdims=True)
    d = xn - m
    std = jnp.sqrt(jnp.sum(d * d, axis=2, keepdims=True) / (HW - 1)) + 1e-5
    t = ((d / std) * params["sge_weight"].reshape(1, groups, 1)
         + params["sge_bias"].reshape(1, groups, 1))
    x1 = (xg * jax.nn.sigmoid(t)[:, :, None, :]).reshape(B, C, HW)
    # ChannelGate
    NG = num_gn_groups
    cg = C // NG
    avg = jnp.mean(x1, axis=2)
    mx = jnp.max(x1, axis=2)

    def gnorm(v):
        vg = v.reshape(B, NG, cg)
        mu = jnp.mean(vg, axis=2, keepdims=True)
        var = jnp.var(vg, axis=2, keepdims=True, ddof=1)
        nrm = (vg - mu) / jnp.sqrt(var + 1e-5)
        return (nrm.reshape(B, C) * params["gn_weight"].reshape(1, C)
                + params["gn_bias"].reshape(1, C))

    scale = jax.nn.sigmoid(gnorm(avg) + gnorm(mx))                      # (B, C)
    x_out = (x1 * scale[:, :, None]).reshape(B, C, H, W)
    chan_wgt = jnp.mean(scale, axis=0)
    return x_out, chan_wgt


def _max_abs_diff(a, b):
    return float(jnp.max(jnp.abs(a.astype(jnp.float32) - b.astype(jnp.float32))))


if __name__ == "__main__":
    key = jax.random.PRNGKey(0)
    B, C, H, W = 2, 32, 8, 8
    groups = 8                      # SGE/Layer_4 groups; GroupNorm uses 4 groups
    x = jax.random.normal(key, (B, C, H, W), jnp.float32)

    # --- main path: fused SpatialGroupEnhance -> ChannelGate (lay_4=False), torch init ---
    params = make_sca_params(C, groups, lay_4=False)
    x_out, chan_wgt = sca_forward(x, params, groups, lay_4=False)
    jax.block_until_ready(x_out)
    r_out, r_wgt = _sca_ref(x, params, groups, lay_4=False)
    assert _max_abs_diff(x_out, r_out) < 2e-3
    assert _max_abs_diff(chan_wgt, r_wgt) < 2e-3

    # --- same path with non-trivial params to exercise all the math (exact divides now) ---
    k1, k2, k3, k4 = jax.random.split(jax.random.PRNGKey(1), 4)
    params_r = {
        "sge_weight": jax.random.normal(k1, (1, groups, 1, 1), jnp.float32),
        "sge_bias": jax.random.normal(k2, (1, groups, 1, 1), jnp.float32),
        "gn_weight": jax.random.normal(k3, (1, C, 1, 1), jnp.float32),
        "gn_bias": jax.random.normal(k4, (1, C, 1, 1), jnp.float32),
    }
    x_out2, chan_wgt2 = sca_forward(x, params_r, groups, lay_4=False)
    r_out2, r_wgt2 = _sca_ref(x, params_r, groups, lay_4=False)
    assert _max_abs_diff(x_out2, r_out2) < 2e-3
    assert _max_abs_diff(chan_wgt2, r_wgt2) < 2e-3

    # --- bf16 I/O smoke test (stats f32, full-tile multiplies in bf16) ---
    xb = x.astype(jnp.bfloat16)
    x_out_b, chan_wgt_b = sca_forward(xb, params_r, groups, lay_4=False)
    jax.block_until_ready(x_out_b)
    assert x_out_b.dtype == jnp.bfloat16
    assert bool(jnp.all(jnp.isfinite(x_out_b.astype(jnp.float32))))
    assert bool(jnp.all(jnp.isfinite(chan_wgt_b)))

    # --- Layer_4 branch (lay_4=True) with big blocks + f32 in-kernel batch-mean ---
    params4 = make_sca_params(C, groups, lay_4=True)
    x_out4, batch_mean4 = sca_forward(x, params4, groups, lay_4=True)
    r_out4, r_bm4 = _sca_ref(x, params4, groups, lay_4=True)
    assert _max_abs_diff(x_out4, r_out4) < 2e-3
    assert _max_abs_diff(batch_mean4, r_bm4) < 2e-3

    k5, k6 = jax.random.split(jax.random.PRNGKey(2), 2)
    params4_r = {
        "l4_weight": jax.random.normal(k5, (1, groups, 1, 1), jnp.float32),
        "l4_bias": jax.random.normal(k6, (1, groups, 1, 1), jnp.float32),
    }
    x_out5, batch_mean5 = sca_forward(x, params4_r, groups, lay_4=True)
    r_out5, r_bm5 = _sca_ref(x, params4_r, groups, lay_4=True)
    assert _max_abs_diff(x_out5, r_out5) < 2e-3
    assert _max_abs_diff(batch_mean5, r_bm5) < 2e-3

    # torch returns chan_wgt/batch_mean via .detach().cpu().numpy().tolist();
    # here they are device arrays — host conversion is trivial:
    _ = [float(v) for v in chan_wgt]

    jax.block_until_ready(x_out5)
    jax.block_until_ready(batch_mean4)
    print("KERNEL_OK")
</pallas_src>

<mosaic_0001>
module attributes {stable_mosaic.version = 11 : i64} {
  func.func @_sca_fused_kernel(%arg0: i32, %arg1: i32, %arg2: memref<1x2x4x64xf32, #tpu.memory_space<vmem>>, %arg3: memref<1x2x1xf32, #tpu.memory_space<vmem>>, %arg4: memref<1x2x1xf32, #tpu.memory_space<vmem>>, %arg5: memref<1x2x4x1xf32, #tpu.memory_space<vmem>>, %arg6: memref<1x2x4x1xf32, #tpu.memory_space<vmem>>, %arg7: memref<1x2x4x64xf32, #tpu.memory_space<vmem>>, %arg8: memref<1x2x4x1xf32, #tpu.memory_space<vmem>>) attributes {dimension_semantics = [#tpu.dimension_semantics<parallel>, #tpu.dimension_semantics<parallel>], iteration_bounds = array<i64: 4, 2>, scalar_prefetch = 0 : i64, scratch_operands = 0 : i64, tpu.core_type = #tpu.core_type<tc>, window_params = [{transform_indices = @transform_0, window_bounds = array<i64: 1, 2, 4, 64>}, {transform_indices = @transform_1, window_bounds = array<i64: 1, 2, 1>}, {transform_indices = @transform_2, window_bounds = array<i64: 1, 2, 1>}, {transform_indices = @transform_3, window_bounds = array<i64: 1, 2, 4, 1>}, {transform_indices = @transform_4, window_bounds = array<i64: 1, 2, 4, 1>}, {transform_indices = @transform_5, window_bounds = array<i64: 1, 2, 4, 64>}, {transform_indices = @transform_6, window_bounds = array<i64: 1, 2, 4, 1>}]} {
    %c0 = arith.constant 0 : index
    %c0_0 = arith.constant 0 : index
    %c0_1 = arith.constant 0 : index
    %c0_2 = arith.constant 0 : index
    %0 = vector.load %arg2[%c0, %c0_0, %c0_1, %c0_2] : memref<1x2x4x64xf32, #tpu.memory_space<vmem>>, vector<1x2x4x64xf32>
    %1 = vector.shape_cast %0 : vector<1x2x4x64xf32> to vector<2x4x64xf32>
    %cst = arith.constant dense<0xFF800000> : vector<2x64xf32>
    %2 = vector.multi_reduction <maximumf>, %1, %cst [1] : vector<2x4x64xf32> to vector<2x64xf32>
    %cst_3 = arith.constant dense<0.000000e+00> : vector<2x64xf32>
    %3 = vector.multi_reduction <add>, %1, %cst_3 [1] : vector<2x4x64xf32> to vector<2x64xf32>
    %cst_4 = arith.constant 4.000000e+00 : f32
    %4 = vector.broadcast %cst_4 : f32 to vector<2x64xf32>
    %5 = arith.divf %3, %4 : vector<2x64xf32>
    %6 = arith.addf %2, %5 : vector<2x64xf32>
    %cst_5 = arith.constant dense<0.000000e+00> : vector<2xf32>
    %7 = vector.multi_reduction <add>, %6, %cst_5 [1] : vector<2x64xf32> to vector<2xf32>
    %8 = vector.shape_cast %7 : vector<2xf32> to vector<2x1xf32>
    %cst_6 = arith.constant 6.400000e+01 : f32
    %9 = vector.broadcast %cst_6 : f32 to vector<2x1xf32>
    %10 = arith.divf %8, %9 : vector<2x1xf32>
    %11 = vector.broadcast %10 : vector<2x1xf32> to vector<2x64xf32>
    %12 = arith.subf %6, %11 : vector<2x64xf32>
    %13 = arith.mulf %12, %12 : vector<2x64xf32>
    %cst_7 = arith.constant dense<0.000000e+00> : vector<2xf32>
    %14 = vector.multi_reduction <add>, %13, %cst_7 [1] : vector<2x64xf32> to vector<2xf32>
    %15 = vector.shape_cast %14 : vector<2xf32> to vector<2x1xf32>
    %cst_8 = arith.constant 0.0158730168 : f32
    %16 = vector.broadcast %cst_8 : f32 to vector<2x1xf32>
    %17 = arith.mulf %15, %16 : vector<2x1xf32>
    %18 = math.sqrt %17 : vector<2x1xf32>
    %cst_9 = arith.constant 9.99999974E-6 : f32
    %19 = vector.broadcast %cst_9 : f32 to vector<2x1xf32>
    %20 = arith.addf %18, %19 : vector<2x1xf32>
    %21 = vector.broadcast %20 : vector<2x1xf32> to vector<2x64xf32>
    %22 = arith.divf %12, %21 : vector<2x64xf32>
    %c0_10 = arith.constant 0 : index
    %c0_11 = arith.constant 0 : index
    %c0_12 = arith.constant 0 : index
    %23 = vector.load %arg3[%c0_10, %c0_11, %c0_12] : memref<1x2x1xf32, #tpu.memory_space<vmem>>, vector<1x2x1xf32>
    %24 = vector.shape_cast %23 : vector<1x2x1xf32> to vector<2x1xf32>
    %25 = vector.broadcast %24 : vector<2x1xf32> to vector<2x64xf32>
    %26 = arith.mulf %22, %25 : vector<2x64xf32>
    %c0_13 = arith.constant 0 : index
    %c0_14 = arith.constant 0 : index
    %c0_15 = arith.constant 0 : index
    %27 = vector.load %arg4[%c0_13, %c0_14, %c0_15] : memref<1x2x1xf32, #tpu.memory_space<vmem>>, vector<1x2x1xf32>
    %28 = vector.shape_cast %27 : vector<1x2x1xf32> to vector<2x1xf32>
    %29 = vector.broadcast %28 : vector<2x1xf32> to vector<2x64xf32>
    %30 = arith.addf %26, %29 : vector<2x64xf32>
    %31 = arith.negf %30 : vector<2x64xf32>
    %32 = math.exp %31 : vector<2x64xf32>
    %cst_16 = arith.constant 1.000000e+00 : f32
    %33 = vector.broadcast %cst_16 : f32 to vector<2x64xf32>
    %34 = arith.addf %33, %32 : vector<2x64xf32>
    %35 = arith.divf %33, %34 : vector<2x64xf32>
    %36 = vector.shape_cast %35 : vector<2x64xf32> to vector<2x1x64xf32>
    %37 = vector.broadcast %36 : vector<2x1x64xf32> to vector<2x4x64xf32>
    %38 = arith.mulf %1, %37 : vector<2x4x64xf32>
    %cst_17 = arith.constant dense<0.000000e+00> : vector<2x4xf32>
    %39 = vector.multi_reduction <add>, %38, %cst_17 [2] : vector<2x4x64xf32> to vector<2x4xf32>
    %40 = vector.shape_cast %39 : vector<2x4xf32> to vector<2x4x1xf32>
    %cst_18 = arith.constant 6.400000e+01 : f32
    %41 = vector.broadcast %cst_18 : f32 to vector<2x4x1xf32>
    %42 = arith.divf %40, %41 : vector<2x4x1xf32>
    %cst_19 = arith.constant dense<0xFF800000> : vector<2x4xf32>
    %43 = vector.multi_reduction <maximumf>, %38, %cst_19 [2] : vector<2x4x64xf32> to vector<2x4xf32>
    %44 = vector.shape_cast %43 : vector<2x4xf32> to vector<2x4x1xf32>
    %c0_20 = arith.constant 0 : index
    %c0_21 = arith.constant 0 : index
    %c0_22 = arith.constant 0 : index
    %c0_23 = arith.constant 0 : index
    %45 = vector.load %arg5[%c0_20, %c0_21, %c0_22, %c0_23] : memref<1x2x4x1xf32, #tpu.memory_space<vmem>>, vector<1x2x4x1xf32>
    %46 = vector.shape_cast %45 : vector<1x2x4x1xf32> to vector<2x4x1xf32>
    %c0_24 = arith.constant 0 : index
    %c0_25 = arith.constant 0 : index
    %c0_26 = arith.constant 0 : index
    %c0_27 = arith.constant 0 : index
    %47 = vector.load %arg6[%c0_24, %c0_25, %c0_26, %c0_27] : memref<1x2x4x1xf32, #tpu.memory_space<vmem>>, vector<1x2x4x1xf32>
    %48 = vector.shape_cast %47 : vector<1x2x4x1xf32> to vector<2x4x1xf32>
    %cst_28 = arith.constant dense<0.000000e+00> : vector<2x1xf32>
    %49 = vector.multi_reduction <add>, %42, %cst_28 [1] : vector<2x4x1xf32> to vector<2x1xf32>
    %50 = vector.shape_cast %49 : vector<2x1xf32> to vector<2x1x1xf32>
    %cst_29 = arith.constant 4.000000e+00 : f32
    %51 = vector.broadcast %cst_29 : f32 to vector<2x1x1xf32>
    %52 = arith.divf %50, %51 : vector<2x1x1xf32>
    %cst_30 = arith.constant dense<0.000000e+00> : vector<1x1xf32>
    %53 = vector.multi_reduction <add>, %52, %cst_30 [0] : vector<2x1x1xf32> to vector<1x1xf32>
    %54 = vector.shape_cast %53 : vector<1x1xf32> to vector<1x1x1xf32>
    %cst_31 = arith.constant 2.000000e+00 : f32
    %55 = vector.broadcast %cst_31 : f32 to vector<1x1x1xf32>
    %56 = arith.divf %54, %55 : vector<1x1x1xf32>
    %57 = vector.broadcast %56 : vector<1x1x1xf32> to vector<2x4x1xf32>
    %58 = arith.subf %42, %57 : vector<2x4x1xf32>
    %59 = arith.mulf %58, %58 : vector<2x4x1xf32>
    %cst_32 = arith.constant dense<0.000000e+00> : vector<2x1xf32>
    %60 = vector.multi_reduction <add>, %59, %cst_32 [1] : vector<2x4x1xf32> to vector<2x1xf32>
    %61 = vector.shape_cast %60 : vector<2x1xf32> to vector<2x1x1xf32>
    %cst_33 = arith.constant dense<0.000000e+00> : vector<1x1xf32>
    %62 = vector.multi_reduction <add>, %61, %cst_33 [0] : vector<2x1x1xf32> to vector<1x1xf32>
    %63 = vector.shape_cast %62 : vector<1x1xf32> to vector<1x1x1xf32>
    %cst_34 = arith.constant 0.142857149 : f32
    %64 = vector.broadcast %cst_34 : f32 to vector<1x1x1xf32>
    %65 = arith.mulf %63, %64 : vector<1x1x1xf32>
    %cst_35 = arith.constant 9.99999974E-6 : f32
    %66 = vector.broadcast %cst_35 : f32 to vector<1x1x1xf32>
    %67 = arith.addf %65, %66 : vector<1x1x1xf32>
    %68 = math.sqrt %67 : vector<1x1x1xf32>
    %69 = vector.broadcast %68 : vector<1x1x1xf32> to vector<2x4x1xf32>
    %70 = arith.divf %58, %69 : vector<2x4x1xf32>
    %71 = arith.mulf %70, %46 : vector<2x4x1xf32>
    %72 = arith.addf %71, %48 : vector<2x4x1xf32>
    %cst_36 = arith.constant dense<0.000000e+00> : vector<2x1xf32>
    %73 = vector.multi_reduction <add>, %44, %cst_36 [1] : vector<2x4x1xf32> to vector<2x1xf32>
    %74 = vector.shape_cast %73 : vector<2x1xf32> to vector<2x1x1xf32>
    %cst_37 = arith.constant 4.000000e+00 : f32
    %75 = vector.broadcast %cst_37 : f32 to vector<2x1x1xf32>
    %76 = arith.divf %74, %75 : vector<2x1x1xf32>
    %cst_38 = arith.constant dense<0.000000e+00> : vector<1x1xf32>
    %77 = vector.multi_reduction <add>, %76, %cst_38 [0] : vector<2x1x1xf32> to vector<1x1xf32>
    %78 = vector.shape_cast %77 : vector<1x1xf32> to vector<1x1x1xf32>
    %cst_39 = arith.constant 2.000000e+00 : f32
    %79 = vector.broadcast %cst_39 : f32 to vector<1x1x1xf32>
    %80 = arith.divf %78, %79 : vector<1x1x1xf32>
    %81 = vector.broadcast %80 : vector<1x1x1xf32> to vector<2x4x1xf32>
    %82 = arith.subf %44, %81 : vector<2x4x1xf32>
    %83 = arith.mulf %82, %82 : vector<2x4x1xf32>
    %cst_40 = arith.constant dense<0.000000e+00> : vector<2x1xf32>
    %84 = vector.multi_reduction <add>, %83, %cst_40 [1] : vector<2x4x1xf32> to vector<2x1xf32>
    %85 = vector.shape_cast %84 : vector<2x1xf32> to vector<2x1x1xf32>
    %cst_41 = arith.constant dense<0.000000e+00> : vector<1x1xf32>
    %86 = vector.multi_reduction <add>, %85, %cst_41 [0] : vector<2x1x1xf32> to vector<1x1xf32>
    %87 = vector.shape_cast %86 : vector<1x1xf32> to vector<1x1x1xf32>
    %cst_42 = arith.constant 0.142857149 : f32
    %88 = vector.broadcast %cst_42 : f32 to vector<1x1x1xf32>
    %89 = arith.mulf %87, %88 : vector<1x1x1xf32>
    %cst_43 = arith.constant 9.99999974E-6 : f32
    %90 = vector.broadcast %cst_43 : f32 to vector<1x1x1xf32>
    %91 = arith.addf %89, %90 : vector<1x1x1xf32>
    %92 = math.sqrt %91 : vector<1x1x1xf32>
    %93 = vector.broadcast %92 : vector<1x1x1xf32> to vector<2x4x1xf32>
    %94 = arith.divf %82, %93 : vector<2x4x1xf32>
    %95 = arith.mulf %94, %46 : vector<2x4x1xf32>
    %96 = arith.addf %95, %48 : vector<2x4x1xf32>
    %97 = arith.addf %72, %96 : vector<2x4x1xf32>
    %98 = arith.negf %97 : vector<2x4x1xf32>
    %99 = math.exp %98 : vector<2x4x1xf32>
    %cst_44 = arith.constant 1.000000e+00 : f32
    %100 = vector.broadcast %cst_44 : f32 to vector<2x4x1xf32>
    %101 = arith.addf %100, %99 : vector<2x4x1xf32>
    %102 = arith.divf %100, %101 : vector<2x4x1xf32>
    %103 = vector.broadcast %102 : vector<2x4x1xf32> to vector<2x4x64xf32>
    %104 = arith.mulf %38, %103 : vector<2x4x64xf32>
    %c0_45 = arith.constant 0 : index
    %c0_46 = arith.constant 0 : index
    %c0_47 = arith.constant 0 : index
    %c0_48 = arith.constant 0 : index
    %105 = vector.load %arg7[%c0_45, %c0_46, %c0_47, %c0_48] : memref<1x2x4x64xf32, #tpu.memory_space<vmem>>, vector<1x2x4x64xf32>
    %106 = vector.shape_cast %105 : vector<1x2x4x64xf32> to vector<2x4x64xf32>
    %107 = vector.shape_cast %104 : vector<2x4x64xf32> to vector<1x2x4x64xf32>
    tpu.vector_store %arg7[%c0_45, %c0_46, %c0_47, %c0_48], %107 {strides = array<i32>} : memref<1x2x4x64xf32, #tpu.memory_space<vmem>>, vector<1x2x4x64xf32>,
    %c0_49 = arith.constant 0 : index
    %c0_50 = arith.constant 0 : index
    %c0_51 = arith.constant 0 : index
    %c0_52 = arith.constant 0 : index
    %108 = vector.load %arg8[%c0_49, %c0_50, %c0_51, %c0_52] : memref<1x2x4x1xf32, #tpu.memory_space<vmem>>, vector<1x2x4x1xf32>
    %109 = vector.shape_cast %108 : vector<1x2x4x1xf32> to vector<2x4x1xf32>
    %110 = vector.shape_cast %102 : vector<2x4x1xf32> to vector<1x2x4x1xf32>
    tpu.vector_store %arg8[%c0_49, %c0_50, %c0_51, %c0_52], %110 {strides = array<i32>} : memref<1x2x4x1xf32, #tpu.memory_space<vmem>>, vector<1x2x4x1xf32>,
    return
  }
  func.func @transform_0(%arg0: i32, %arg1: i32) -> (i32, i32, i32, i32) {
    %c4_i32 = arith.constant 4 : i32
    %0 = arith.muli %arg1, %c4_i32 : i32
    %1 = arith.addi %0, %arg0 : i32
    %c0_i32 = arith.constant 0 : i32
    %c0_i32_0 = arith.constant 0 : i32
    %c0_i32_1 = arith.constant 0 : i32
    %c0_i32_2 = arith.constant 0 : i32
    return %1, %c0_i32, %c0_i32_0, %c0_i32_1 : i32, i32, i32, i32
  }
  func.func @transform_1(%arg0: i32, %arg1: i32) -> (i32, i32, i32) {
    %c0_i32 = arith.constant 0 : i32
    %c0_i32_0 = arith.constant 0 : i32
    %c0_i32_1 = arith.constant 0 : i32
    return %arg0, %c0_i32, %c0_i32_0 : i32, i32, i32
  }
  func.func @transform_2(%arg0: i32, %arg1: i32) -> (i32, i32, i32) {
    %c0_i32 = arith.constant 0 : i32
    %c0_i32_0 = arith.constant 0 : i32
    %c0_i32_1 = arith.constant 0 : i32
    return %arg0, %c0_i32, %c0_i32_0 : i32, i32, i32
  }
  func.func @transform_3(%arg0: i32, %arg1: i32) -> (i32, i32, i32, i32) {
    %c0_i32 = arith.constant 0 : i32
    %c0_i32_0 = arith.constant 0 : i32
    %c0_i32_1 = arith.constant 0 : i32
    %c0_i32_2 = arith.constant 0 : i32
    return %arg0, %c0_i32, %c0_i32_0, %c0_i32_1 : i32, i32, i32, i32
  }
  func.func @transform_4(%arg0: i32, %arg1: i32) -> (i32, i32, i32, i32) {
    %c0_i32 = arith.constant 0 : i32
    %c0_i32_0 = arith.constant 0 : i32
    %c0_i32_1 = arith.constant 0 : i32
    %c0_i32_2 = arith.constant 0 : i32
    return %arg0, %c0_i32, %c0_i32_0, %c0_i32_1 : i32, i32, i32, i32
  }
  func.func @transform_5(%arg0: i32, %arg1: i32) -> (i32, i32, i32, i32) {
    %c4_i32 = arith.constant 4 : i32
    %0 = arith.muli %arg1, %c4_i32 : i32
    %1 = arith.addi %0, %arg0 : i32
    %c0_i32 = arith.constant 0 : i32
    %c0_i32_0 = arith.constant 0 : i32
    %c0_i32_1 = arith.constant 0 : i32
    %c0_i32_2 = arith.constant 0 : i32
    return %1, %c0_i32, %c0_i32_0, %c0_i32_1 : i32, i32, i32, i32
  }
  func.func @transform_6(%arg0: i32, %arg1: i32) -> (i32, i32, i32, i32) {
    %c4_i32 = arith.constant 4 : i32
    %0 = arith.muli %arg1, %c4_i32 : i32
    %1 = arith.addi %0, %arg0 : i32
    %c0_i32 = arith.constant 0 : i32
    %c0_i32_0 = arith.constant 0 : i32
    %c0_i32_1 = arith.constant 0 : i32
    %c0_i32_2 = arith.constant 0 : i32
    return %1, %c0_i32, %c0_i32_0, %c0_i32_1 : i32, i32, i32, i32
  }
}

</mosaic_0001>

<llo_original>
// kernel: tpu_custom_call.1
$region0: #{tpu_custom_call.1}
  #allocation0 [shape = 'u32[]', space=smem, size = 0x4, offset = 0x4, fixed_abs, tag = 'smem constant byte address 0x4 - core index']
  #allocation1 [shape = 'u32[144,128]{1,0:T(1,128)}', space=vmem, size = 0x12000, scoped, tag = 'internal scratch']
  %s0 = inlined_call_operand.vmem [shape: f32[8,2,4,64], index: 0, kind: input, shape index: {}]
  %s1 = inlined_call_operand.vmem [shape: f32[4,2,1], index: 1, kind: input, shape index: {}]
  %s2 = inlined_call_operand.vmem [shape: f32[4,2,1], index: 2, kind: input, shape index: {}]
  %s3 = inlined_call_operand.vmem [shape: f32[4,2,4,1], index: 3, kind: input, shape index: {}]
  %s4 = inlined_call_operand.vmem [shape: f32[4,2,4,1], index: 4, kind: input, shape index: {}]
  %s5 = inlined_call_operand.hbm [shape: f32[8,2,4,64], index: 5, kind: output, shape index: {0}]
  %s6 = inlined_call_operand.vmem [shape: f32[8,2,4,1], index: 6, kind: output, shape index: {1}]
  %7 = xla_tuple %s5, %s6
  %s8 = sld [smem:[#allocation0]]
  $region61: #{tpu_custom_call.1} parent=0
    _
  %s10 = ssub.s32 1, %s8
  %s11 = scalar_select 0, %s10, %s8
  $region1: #{tpu_custom_call.1} parent=0
    #allocation2 [shape = 'u8[8192]{0}', space=vmem, size = 0x2000, scoped, tag = 'output window, operand 0']
    #allocation3 [shape = 's32[2]{0}', space=sflag, size = 0x8, scoped, tag = 'scoped memory for tpu_custom_call.1']
    %12 = vsyncpa [#allocation3], 0
    %s13 = scalar_lea.sflag [#allocation3], 1
    %14 = vsyncpa %s13, 0
    loop: start=0, step=1, limit=10
    $region2: #{tpu_custom_call.1} parent=1 // loop_pre_header
      _
    $region3: #{tpu_custom_call.1} parent=1 // loop_header
      %s16 = sphi 0, %s20
      %p17 = scmp.ge.s32.totalorder %s16, 10
      %s23 = sphi 0, %s35
      %s24 = sphi 0, %s31
      %s25 = sphi 0, %s23
      %s26 = sphi 0, %s24
      %s27 = sphi 0, %s25
      %s28 = sphi 0, %s26
      %s42 = sphi 0, %s44
      %s45 = sphi 0, %s42
      %s46 = sphi 0, %s45
      %s62 = sphi 0, %s46
      %s68 = sphi 0, %s70
      %s71 = sphi 0, %s68
      %s72 = sphi 0, %s71
      %s88 = sphi 0, %s72
      %s94 = sphi 0, %s96
      %s97 = sphi 0, %s94
      %s98 = sphi 0, %s97
      %s114 = sphi 0, %s98
      %s120 = sphi 0, %s122
      %s123 = sphi 0, %s120
      %s124 = sphi 0, %s123
      %s140 = sphi 0, %s124
      %s146 = sphi 0, %s148
      %s149 = sphi 0, %s146
      %s150 = sphi 0, %s149
      %s166 = sphi 0, %s150
      %s176 = sphi 0, %s178
      %s179 = sphi 0, %s176
      %s180 = sphi 0, %s179
      %s196 = sphi 0, %s180
      %s206 = sphi 0, %s208
      %s209 = sphi 0, %s206
      %s210 = sphi 0, %s209
      %s226 = sphi 0, %s210
    $region4: #{tpu_custom_call.1} parent=1 // loop_header_branch
      %19 = sbr.rel (%p17) target = $region8
    $region5: #{tpu_custom_call.1} parent=1 // loop_body
      %s21 = ssub.s32 %s16, 1
      %s22 = ssub.s32 %s16, 2
      %s29 = sadd.s32 1, %s24
      %p30 = scmp.ge.s32.totalorder %s29, 2
      %s31 = scalar_select %p30, 0, %s29
      %s32 = sadd.s32 1, %s23
      %s33 = scalar_select %p30, %s32, %s23
      %p34 = scmp.ge.s32.totalorder %s33, 4
      %s35 = scalar_select %p34, 0, %s33
      %s36 = smul.u32 %s24, 4
      %s37 = sadd.s32 %s36, %s23
      %s38 = smul.u32 %s31, 4
      %s39 = sadd.s32 %s38, %s35
      %s40 = ssub.s32 %s37, %s39
      %p41 = scmp.eq.s32.totalorder %s40, 0
      %s43 = sadd.s32 %s42, 1
      %s44 = scalar_select %p41, %s42, %s43
      %p47 = pneg %p41
      %p48 = scmp.eq.s32.totalorder %s16, 7
      %p49 = por %p47, %p48
      %p50 = scmp.ne.s32.totalorder %s42, %s45
      %p51 = scmp.eq.s32.totalorder %s16, 0
      %p52 = por %p50, %p51
      %p53 = scmp.ne.s32.totalorder %s42, %s45
      %p54 = scmp.eq.s32.totalorder %s21, 7
      %p55 = por %p53, %p54
      %p56 = scmp.ne.s32.totalorder %s45, %s46
      %p57 = scmp.eq.s32.totalorder %s21, 0
      %p58 = por %p56, %p57
      %p59 = scmp.ne.s32.totalorder %s45, %s46
      %p60 = scmp.eq.s32.totalorder %s22, 7
      %p61 = por %p59, %p60
      %p63 = scmp.ne.s32.totalorder %s46, %s62
      %p64 = scmp.eq.s32.totalorder %s22, 0
      %p65 = por %p63, %p64
      %s66 = ssub.s32 %s23, %s35
      %p67 = scmp.eq.s32.totalorder %s66, 0
      %s69 = sadd.s32 %s68, 1
      %s70 = scalar_select %p67, %s68, %s69
      %p73 = pneg %p67
      %p74 = scmp.eq.s32.totalorder %s16, 7
      %p75 = por %p73, %p74
      %p76 = scmp.ne.s32.totalorder %s68, %s71
      %p77 = scmp.eq.s32.totalorder %s16, 0
      %p78 = por %p76, %p77
      %p79 = scmp.ne.s32.totalorder %s68, %s71
      %p80 = scmp.eq.s32.totalorder %s21, 7
      %p81 = por %p79, %p80
      %p82 = scmp.ne.s32.totalorder %s71, %s72
      %p83 = scmp.eq.s32.totalorder %s21, 0
      %p84 = por %p82, %p83
      %p85 = scmp.ne.s32.totalorder %s71, %s72
      %p86 = scmp.eq.s32.totalorder %s22, 7
      %p87 = por %p85, %p86
      %p89 = scmp.ne.s32.totalorder %s72, %s88
      %p90 = scmp.eq.s32.totalorder %s22, 0
      %p91 = por %p89, %p90
      %s92 = ssub.s32 %s23, %s35
      %p93 = scmp.eq.s32.totalorder %s92, 0
      %s95 = sadd.s32 %s94, 1
      %s96 = scalar_select %p93, %s94, %s95
      %p99 = pneg %p93
      %p100 = scmp.eq.s32.totalorder %s16, 7
      %p101 = por %p99, %p100
      %p102 = scmp.ne.s32.totalorder %s94, %s97
      %p103 = scmp.eq.s32.totalorder %s16, 0
      %p104 = por %p102, %p103
      %p105 = scmp.ne.s32.totalorder %s94, %s97
      %p106 = scmp.eq.s32.totalorder %s21, 7
      %p107 = por %p105, %p106
      %p108 = scmp.ne.s32.totalorder %s97, %s98
      %p109 = scmp.eq.s32.totalorder %s21, 0
      %p110 = por %p108, %p109
      %p111 = scmp.ne.s32.totalorder %s97, %s98
      %p112 = scmp.eq.s32.totalorder %s22, 7
      %p113 = por %p111, %p112
      %p115 = scmp.ne.s32.totalorder %s98, %s114
      %p116 = scmp.eq.s32.totalorder %s22, 0
      %p117 = por %p115, %p116
      %s118 = ssub.s32 %s23, %s35
      %p119 = scmp.eq.s32.totalorder %s118, 0
      %s121 = sadd.s32 %s120, 1
      %s122 = scalar_select %p119, %s120, %s121
      %p125 = pneg %p119
      %p126 = scmp.eq.s32.totalorder %s16, 7
      %p127 = por %p125, %p126
      %p128 = scmp.ne.s32.totalorder %s120, %s123
      %p129 = scmp.eq.s32.totalorder %s16, 0
      %p130 = por %p128, %p129
      %p131 = scmp.ne.s32.totalorder %s120, %s123
      %p132 = scmp.eq.s32.totalorder %s21, 7
      %p133 = por %p131, %p132
      %p134 = scmp.ne.s32.totalorder %s123, %s124
      %p135 = scmp.eq.s32.totalorder %s21, 0
      %p136 = por %p134, %p135
      %p137 = scmp.ne.s32.totalorder %s123, %s124
      %p138 = scmp.eq.s32.totalorder %s22, 7
      %p139 = por %p137, %p138
      %p141 = scmp.ne.s32.totalorder %s124, %s140
      %p142 = scmp.eq.s32.totalorder %s22, 0
      %p143 = por %p141, %p142
      %s144 = ssub.s32 %s23, %s35
      %p145 = scmp.eq.s32.totalorder %s144, 0
      %s147 = sadd.s32 %s146, 1
      %s148 = scalar_select %p145, %s146, %s147
      %p151 = pneg %p145
      %p152 = scmp.eq.s32.totalorder %s16, 7
      %p153 = por %p151, %p152
      %p154 = scmp.ne.s32.totalorder %s146, %s149
      %p155 = scmp.eq.s32.totalorder %s16, 0
      %p156 = por %p154, %p155
      %p157 = scmp.ne.s32.totalorder %s146, %s149
      %p158 = scmp.eq.s32.totalorder %s21, 7
      %p159 = por %p157, %p158
      %p160 = scmp.ne.s32.totalorder %s149, %s150
      %p161 = scmp.eq.s32.totalorder %s21, 0
      %p162 = por %p160, %p161
      %p163 = scmp.ne.s32.totalorder %s149, %s150
      %p164 = scmp.eq.s32.totalorder %s22, 7
      %p165 = por %p163, %p164
      %p167 = scmp.ne.s32.totalorder %s150, %s166
      %p168 = scmp.eq.s32.totalorder %s22, 0
      %p169 = por %p167, %p168
      %s170 = smul.u32 %s24, 4
      %s171 = sadd.s32 %s170, %s23
      %s172 = smul.u32 %s31, 4
      %s173 = sadd.s32 %s172, %s35
      %s174 = ssub.s32 %s171, %s173
      %p175 = scmp.eq.s32.totalorder %s174, 0
      %s177 = sadd.s32 %s176, 1
      %s178 = scalar_select %p175, %s176, %s177
      %p181 = pneg %p175
      %p182 = scmp.eq.s32.totalorder %s16, 7
      %p183 = por %p181, %p182
      %p184 = scmp.ne.s32.totalorder %s176, %s179
      %p185 = scmp.eq.s32.totalorder %s16, 0
      %p186 = por %p184, %p185
      %p187 = scmp.ne.s32.totalorder %s176, %s179
      %p188 = scmp.eq.s32.totalorder %s21, 7
      %p189 = por %p187, %p188
      %p190 = scmp.ne.s32.totalorder %s179, %s180
      %p191 = scmp.eq.s32.totalorder %s21, 0
      %p192 = por %p190, %p191
      %p193 = scmp.ne.s32.totalorder %s179, %s180
      %p194 = scmp.eq.s32.totalorder %s22, 7
      %p195 = por %p193, %p194
      %p197 = scmp.ne.s32.totalorder %s180, %s196
      %p198 = scmp.eq.s32.totalorder %s22, 0
      %p199 = por %p197, %p198
      %s200 = smul.u32 %s24, 4
      %s201 = sadd.s32 %s200, %s23
      %s202 = smul.u32 %s31, 4
      %s203 = sadd.s32 %s202, %s35
      %s204 = ssub.s32 %s201, %s203
      %p205 = scmp.eq.s32.totalorder %s204, 0
      %s207 = sadd.s32 %s206, 1
      %s208 = scalar_select %p205, %s206, %s207
      %p211 = pneg %p205
      %p212 = scmp.eq.s32.totalorder %s16, 7
      %p213 = por %p211, %p212
      %p214 = scmp.ne.s32.totalorder %s206, %s209
      %p215 = scmp.eq.s32.totalorder %s16, 0
      %p216 = por %p214, %p215
      %p217 = scmp.ne.s32.totalorder %s206, %s209
      %p218 = scmp.eq.s32.totalorder %s21, 7
      %p219 = por %p217, %p218
      %p220 = scmp.ne.s32.totalorder %s209, %s210
      %p221 = scmp.eq.s32.totalorder %s21, 0
      %p222 = por %p220, %p221
      %p223 = scmp.ne.s32.totalorder %s209, %s210
      %p224 = scmp.eq.s32.totalorder %s22, 7
      %p225 = por %p223, %p224
      %p227 = scmp.ne.s32.totalorder %s210, %s226
      %p228 = scmp.eq.s32.totalorder %s22, 0
      %p229 = por %p227, %p228
      %p230 = scmp.le.s32.totalorder 1, %s16
      %p231 = scmp.lt.s32.totalorder %s16, 9
      %p232 = pnand %p230, %p231
      %p233 = pneg %p232
      // Predicated region
      $region9: #{tpu_custom_call.1} parent=5 // pred_check
        _
      $region10: #{tpu_custom_call.1} parent=5 // pred_check_branch
        %235 = sbr.rel (%p232) target = $region12
      $region11: #{tpu_custom_call.1} parent=5 // pred_region
        %s236 = ssub.s32 %s16, 1
      $region12: #{tpu_custom_call.1} parent=5 // pred_fallthru
        _
      %p237 = scmp.lt.s32.totalorder %s16, 8
      // Predicated region
      $region13: #{tpu_custom_call.1} parent=5 // pred_check
        %p238 = pneg %p237
      $region14: #{tpu_custom_call.1} parent=5 // pred_check_branch
        %240 = sbr.rel (%p238) target = $region16
      $region15: #{tpu_custom_call.1} parent=5 // pred_region
        // Predicated region
        $region17: #{tpu_custom_call.1} parent=15 // pred_check
          %p241 = pneg %p52
        $region18: #{tpu_custom_call.1} parent=15 // pred_check_branch
          %243 = sbr.rel (%p241) target = $region20
        $region19: #{tpu_custom_call.1} parent=15 // pred_region
          %s244 = smul.u32 %s24, 4
          %s245 = sadd.s32 %s244, %s23
          %p246 = scmp.lt.s32.totalorder %s245, 7
          %s247 = scalar_select %p246, %s245, 7
          %s248 = smul.addr %s247, 2
          %s249 = smul.addr %s248, 4
          %s250 = scalar_lea.vmem %s0, %s249
          %s251 = smul.u32 %s24, 4
          %s252 = sadd.s32 %s251, %s23
        $region20: #{tpu_custom_call.1} parent=15 // pred_fallthru
          _
        // Predicated region
        $region21: #{tpu_custom_call.1} parent=15 // pred_check
          %p253 = pneg %p78
        $region22: #{tpu_custom_call.1} parent=15 // pred_check_branch
          %255 = sbr.rel (%p253) target = $region24
        $region23: #{tpu_custom_call.1} parent=15 // pred_region
          %p256 = scmp.lt.s32.totalorder %s23, 3
          %s257 = scalar_select %p256, %s23, 3
          %s258 = smul.addr %s257, 2
          %s259 = scalar_lea.vmem %s1, %s258
        $region24: #{tpu_custom_call.1} parent=15 // pred_fallthru
          _
        // Predicated region
        $region25: #{tpu_custom_call.1} parent=15 // pred_check
          %p260 = pneg %p104
        $region26: #{tpu_custom_call.1} parent=15 // pred_check_branch
          %262 = sbr.rel (%p260) target = $region28
        $region27: #{tpu_custom_call.1} parent=15 // pred_region
          %p263 = scmp.lt.s32.totalorder %s23, 3
          %s264 = scalar_select %p263, %s23, 3
          %s265 = smul.addr %s264, 2
          %s266 = scalar_lea.vmem %s2, %s265
        $region28: #{tpu_custom_call.1} parent=15 // pred_fallthru
          _
        // Predicated region
        $region29: #{tpu_custom_call.1} parent=15 // pred_check
          %p267 = pneg %p130
        $region30: #{tpu_custom_call.1} parent=15 // pred_check_branch
          %269 = sbr.rel (%p267) target = $region32
        $region31: #{tpu_custom_call.1} parent=15 // pred_region
          %p270 = scmp.lt.s32.totalorder %s23, 3
          %s271 = scalar_select %p270, %s23, 3
          %s272 = smul.addr %s271, 2
          %s273 = smul.addr %s272, 4
          %s274 = scalar_lea.vmem %s3, %s273
        $region32: #{tpu_custom_call.1} parent=15 // pred_fallthru
          _
        // Predicated region
        $region33: #{tpu_custom_call.1} parent=15 // pred_check
          %p275 = pneg %p156
        $region34: #{tpu_custom_call.1} parent=15 // pred_check_branch
          %277 = sbr.rel (%p275) target = $region36
        $region35: #{tpu_custom_call.1} parent=15 // pred_region
          %p278 = scmp.lt.s32.totalorder %s23, 3
          %s279 = scalar_select %p278, %s23, 3
          %s280 = smul.addr %s279, 2
          %s281 = smul.addr %s280, 4
          %s282 = scalar_lea.vmem %s4, %s281
        $region36: #{tpu_custom_call.1} parent=15 // pred_fallthru
          _
      $region16: #{tpu_custom_call.1} parent=5 // pred_fallthru
        _
      %p283 = scmp.le.s32.totalorder 1, %s16
      %p284 = scmp.lt.s32.totalorder %s16, 9
      %p285 = pnand %p283, %p284
      %p286 = pneg %p285
      // Predicated region
      $region37: #{tpu_custom_call.1} parent=5 // pred_check
        _
      $region38: #{tpu_custom_call.1} parent=5 // pred_check_branch
        %288 = sbr.rel (%p285) target = $region40
      $region39: #{tpu_custom_call.1} parent=5 // pred_region
        %s289 = ssub.s32 %s16, 1
        %s290 = smul.u32 %s26, 4
        %s291 = sadd.s32 %s290, %s25
        %p292 = scmp.lt.s32.totalorder %s291, 7
        %s293 = scalar_select %p292, %s291, 7
        %s294 = smul.addr %s293, 2
        %s295 = smul.addr %s294, 4
        %s296 = scalar_lea.vmem %s0, %s295
        %p297 = pneg %p58
        %p298 = pneg %p55
        %p299 = scmp.lt.s32.totalorder %s25, 3
        %s300 = scalar_select %p299, %s25, 3
        %s301 = smul.addr %s300, 2
        %s302 = scalar_lea.vmem %s1, %s301
        %p303 = pneg %p84
        %p304 = pneg %p81
        %p305 = scmp.lt.s32.totalorder %s25, 3
        %s306 = scalar_select %p305, %s25, 3
        %s307 = smul.addr %s306, 2
        %s308 = scalar_lea.vmem %s2, %s307
        %p309 = pneg %p110
        %p310 = pneg %p107
        %p311 = scmp.lt.s32.totalorder %s25, 3
        %s312 = scalar_select %p311, %s25, 3
        %s313 = smul.addr %s312, 2
        %s314 = smul.addr %s313, 4
        %s315 = scalar_lea.vmem %s3, %s314
        %p316 = pneg %p136
        %p317 = pneg %p133
        %p318 = scmp.lt.s32.totalorder %s25, 3
        %s319 = scalar_select %p318, %s25, 3
        %s320 = smul.addr %s319, 2
        %s321 = smul.addr %s320, 4
        %s322 = scalar_lea.vmem %s4, %s321
        %p323 = pneg %p162
        %p324 = pneg %p159
        %p325 = pneg %p192
        %p326 = pneg %p189
        %s327 = sand.u32 %s179, 1
        %s328 = scalar_lea.sflag [#allocation3], %s327
        %s329 = sand.u32 %s179, 1
        %s330 = smul.addr %s329, 8
        %s331 = scalar_lea.vmem [#allocation2], %s330
        %p332 = pneg %p222
        %p333 = pneg %p219
        %s334 = smul.u32 %s26, 4
        %s335 = sadd.s32 %s334, %s25
        %p336 = scmp.lt.s32.totalorder %s335, 7
        %s337 = scalar_select %p336, %s335, 7
        %s338 = smul.addr %s337, 2
        %s339 = smul.addr %s338, 4
        %s340 = scalar_lea.vmem %s6, %s339
        %s341 = smul.u32 %s26, 4
        %s342 = sadd.s32 %s341, %s25
        %p343 = scmp.lt.s32.totalorder %s342, 7
        %s344 = scalar_select %p343, %s342, 7
        %s345 = smul.addr %s344, 2
        %s346 = smul.addr %s345, 4
        %s347 = scalar_lea.vmem %s0, %s346
        %s348 = smul.u32 %s26, 4
        %s349 = sadd.s32 %s348, %s25
        %p350 = scmp.lt.s32.totalorder %s25, 3
        %s351 = scalar_select %p350, %s25, 3
        %s352 = smul.addr %s351, 2
        %s353 = scalar_lea.vmem %s1, %s352
        %p354 = scmp.lt.s32.totalorder %s25, 3
        %s355 = scalar_select %p354, %s25, 3
        %s356 = smul.addr %s355, 2
        %s357 = scalar_lea.vmem %s2, %s356
        %p358 = scmp.lt.s32.totalorder %s25, 3
        %s359 = scalar_select %p358, %s25, 3
        %s360 = smul.addr %s359, 2
        %s361 = smul.addr %s360, 4
        %s362 = scalar_lea.vmem %s3, %s361
        %p363 = scmp.lt.s32.totalorder %s25, 3
        %s364 = scalar_select %p363, %s25, 3
        %s365 = smul.addr %s364, 2
        %s366 = smul.addr %s365, 4
        %s367 = scalar_lea.vmem %s4, %s366
        %s368 = smul.u32 %s26, 4
        %s369 = sadd.s32 %s368, %s25
        %s370 = smul.u32 %s26, 4
        %s371 = sadd.s32 %s370, %s25
        %p372 = scmp.lt.s32.totalorder %s371, 7
        %s373 = scalar_select %p372, %s371, 7
        %s374 = smul.addr %s373, 2
        %s375 = smul.addr %s374, 4
        %s376 = scalar_lea.vmem %s6, %s375
        %s377 = smul.u32 %s26, 4
        %s378 = sadd.s32 %s377, %s25
        %v379 = vld [vmem:[%s347] sm:$0xf]
        %v380 = vld [vmem:[%s347 + $0x4] sm:$0xf]
        %vm381 = vcmask 519168
        %v382 = vsel %vm381, %v379, -inf
        %v383 = vrot.slane %v382, 4
        %v384 = vmax.f32 %v382, %v383
        %v385 = vrot.slane %v384, 2
        %v386 = vmax.f32 %v384, %v385
        %v387 = vrot.slane %v386, 1
        %v388 = vmax.f32 %v386, %v387
        %v389 = vsel %vm381, %v380, -inf
        %v390 = vrot.slane %v389, 4
        %v391 = vmax.f32 %v389, %v390
        %v392 = vrot.slane %v391, 2
        %v393 = vmax.f32 %v391, %v392
        %v394 = vrot.slane %v393, 1
        %v395 = vmax.f32 %v393, %v394
        %v396 = vsel %vm381, %v379, 0.0
        %v397 = vrot.slane %v396, 4
        %v398 = vadd.f32 %v396, %v397
        %v399 = vrot.slane %v398, 2
        %v400 = vadd.f32 %v398, %v399
        %v401 = vrot.slane %v400, 1
        %v402 = vadd.f32 %v400, %v401
        %v403 = vsel %vm381, %v380, 0.0
        %v404 = vrot.slane %v403, 4
        %v405 = vadd.f32 %v403, %v404
        %v406 = vrot.slane %v405, 2
        %v407 = vadd.f32 %v405, %v406
        %v408 = vrot.slane %v407, 1
        %v409 = vadd.f32 %v407, %v408
        %v410 = vrcp.pop 4.0
        %v411 = vmul.f32 %v402, %v410
        %v412 = vmul.f32 %v409, %v410
        %v413 = vadd.f32 %v388, %v411
        %v414 = vadd.f32 %v395, %v412
        %vm417 = vcmask 1041409
        %v418 = vsel %vm417, %v414, %v413
        %vm420 = vcmask 517120
        %v421 = vsel %vm420, %v418, 0.0
        %422 = vadd.xlane.f32.xlu0 %v421
        %v423 = vpop.xlane.xlu0 %422
        %v424 = vrcp.pop 64.0
        %v425 = vmul.f32 %v423, %v424
        %v427 = vrot.slane %v425, 1
        %v430 = vsub.f32 %v413, %v425
        %v431 = vsub.f32 %v414, %v427
        %v432 = vmul.f32 %v430, %v430
        %v433 = vmul.f32 %v431, %v431
        %v436 = vrot.slane %v433, 7
        %v437 = vsel %vm417, %v436, %v432
        %v439 = vsel %vm420, %v437, 0.0
        %440 = vadd.xlane.f32.xlu0 %v439
        %v441 = vpop.xlane.xlu0 %440
        %v442 = vmul.f32 %v441, 0.015873017
        %v443 = vrsqrt.pop %v442
        %v444 = vmul.f32 %v442, %v443
        %vm445 = vcmp.eq.f32.partialorder %v442, inf
        %v446 = vsel %vm445, %v442, %v444
        %vm447 = vcmp.eq.f32.partialorder %v442, 0.0
        %v448 = vand.u32 %v442, 2147483648
        %v449 = vsel %vm447, %v448, %v446
        %v450 = vadd.f32 %v449, 1e-05
        %v452 = vrot.slane %v450, 1
        %v455 = vrcp.pop %v450
        %v456 = vmul.f32 %v430, %v455
        %v457 = vrcp.pop %v452
        %v458 = vmul.f32 %v431, %v457
        %v459 = vld [vmem:[%s353] sm:$0x3]
        %461 = vset.pattern.permute.xlu0 0
        %462 = vperm.xlu0 %461, %v459
        %v463 = vpop.permute.xlu0 %462
        %v464 = vrot.slane %v463, 1
        %v467 = vmul.f32 %v456, %v463
        %v468 = vmul.f32 %v458, %v464
        %v469 = vld [vmem:[%s357] sm:$0x3]
        %471 = vset.pattern.permute.xlu0 0
        %472 = vperm.xlu0 %471, %v469
        %v473 = vpop.permute.xlu0 %472
        %v474 = vrot.slane %v473, 1
        %v477 = vadd.f32 %v467, %v473
        %v478 = vadd.f32 %v468, %v474
        %v479 = vxor.u32 %v477, 2147483648
        %v480 = vxor.u32 %v478, 2147483648
        %v481 = vmul.f32 %v479, 1.442695
        %v482 = vpow.pop %v481
        %v483 = vmul.f32 %v480, 1.442695
        %v484 = vpow.pop %v483
        %v485 = vadd.f32 %v482, 1.0
        %v486 = vadd.f32 %v484, 1.0
        %v487 = vrcp.pop %v485
        %v488 = vmul.f32 1.0, %v487
        %v489 = vrcp.pop %v486
        %v490 = vmul.f32 1.0, %v489
        %v491 = vlaneseq
        %v492 = vshrl.u32 %v491, 7
        %v493 = vsub.s32 0, %v492
        %v494 = vrot.slane %v488, %v493
        %v495 = vlaneseq
        %v496 = vshrl.u32 %v495, 7
        %v497 = vsub.s32 0, %v496
        %v498 = vrot.slane %v490, %v497
        %v499 = vmul.f32 %v379, %v494
        %v500 = vmul.f32 %v380, %v498
        %v501 = vsel %vm381, %v499, 0.0
        %502 = vadd.xlane.f32.xlu0 %v501
        %v503 = vpop.xlane.xlu0 %502
        %v504 = vsel %vm381, %v500, 0.0
        %505 = vadd.xlane.f32.xlu0 %v504
        %v506 = vpop.xlane.xlu0 %505
        %v507 = vmul.f32 %v503, %v424
        %v508 = vmul.f32 %v506, %v424
        %v509 = vsel %vm381, %v499, -inf
        %510 = vmax.xlane.f32.xlu0 %v509
        %v511 = vpop.xlane.xlu0 %510
        %v512 = vsel %vm381, %v500, -inf
        %513 = vmax.xlane.f32.xlu0 %v512
        %v514 = vpop.xlane.xlu0 %513
        %v515 = vld [vmem:[%s362] sm:$0xf]
        %v516 = vld [vmem:[%s362 + $0x4] sm:$0xf]
        %v517 = vld [vmem:[%s367] sm:$0xf]
        %v518 = vld [vmem:[%s367 + $0x4] sm:$0xf]
        %vm519 = vcmask 1043456
        %v520 = vsel %vm519, %v507, 0.0
        %v521 = vrot.slane %v520, 4
        %v522 = vadd.f32 %v520, %v521
        %v523 = vrot.slane %v522, 2
        %v524 = vadd.f32 %v522, %v523
        %v525 = vrot.slane %v524, 1
        %v526 = vadd.f32 %v524, %v525
        %v527 = vsel %vm519, %v508, 0.0
        %v528 = vrot.slane %v527, 4
        %v529 = vadd.f32 %v527, %v528
        %v530 = vrot.slane %v529, 2
        %v531 = vadd.f32 %v529, %v530
        %v532 = vrot.slane %v531, 1
        %v533 = vadd.f32 %v531, %v532
        %v534 = vmul.f32 %v526, %v410
        %v535 = vmul.f32 %v533, %v410
        %v536 = vadd.f32 %v534, %v535
        %v537 = vrcp.pop 2.0
        %v538 = vmul.f32 %v536, %v537
        %v539 = vsub.f32 %v507, %v538
        %v540 = vsub.f32 %v508, %v538
        %v541 = vmul.f32 %v539, %v539
        %v542 = vmul.f32 %v540, %v540
        %v543 = vsel %vm519, %v541, 0.0
        %v544 = vrot.slane %v543, 4
        %v545 = vadd.f32 %v543, %v544
        %v546 = vrot.slane %v545, 2
        %v547 = vadd.f32 %v545, %v546
        %v548 = vrot.slane %v547, 1
        %v549 = vadd.f32 %v547, %v548
        %v550 = vsel %vm519, %v542, 0.0
        %v551 = vrot.slane %v550, 4
        %v552 = vadd.f32 %v550, %v551
        %v553 = vrot.slane %v552, 2
        %v554 = vadd.f32 %v552, %v553
        %v555 = vrot.slane %v554, 1
        %v556 = vadd.f32 %v554, %v555
        %v557 = vadd.f32 %v549, %v556
        %v558 = vmul.f32 %v557, 0.14285715
        %v559 = vadd.f32 %v558, 1e-05
        %v560 = vrsqrt.pop %v559
        %v561 = vmul.f32 %v559, %v560
        %vm562 = vcmp.eq.f32.partialorder %v559, inf
        %v563 = vsel %vm562, %v559, %v561
        %vm564 = vcmp.eq.f32.partialorder %v559, 0.0
        %v565 = vand.u32 %v559, 2147483648
        %v566 = vsel %vm564, %v565, %v563
        %v567 = vrcp.pop %v566
        %v568 = vmul.f32 %v539, %v567
        %v569 = vmul.f32 %v540, %v567
        %v570 = vmul.f32 %v568, %v515
        %v571 = vmul.f32 %v569, %v516
        %v572 = vadd.f32 %v570, %v517
        %v573 = vadd.f32 %v571, %v518
        %v574 = vsel %vm519, %v511, 0.0
        %v575 = vrot.slane %v574, 4
        %v576 = vadd.f32 %v574, %v575
        %v577 = vrot.slane %v576, 2
        %v578 = vadd.f32 %v576, %v577
        %v579 = vrot.slane %v578, 1
        %v580 = vadd.f32 %v578, %v579
        %v581 = vsel %vm519, %v514, 0.0
        %v582 = vrot.slane %v581, 4
        %v583 = vadd.f32 %v581, %v582
        %v584 = vrot.slane %v583, 2
        %v585 = vadd.f32 %v583, %v584
        %v586 = vrot.slane %v585, 1
        %v587 = vadd.f32 %v585, %v586
        %v588 = vmul.f32 %v580, %v410
        %v589 = vmul.f32 %v587, %v410
        %v590 = vadd.f32 %v588, %v589
        %v591 = vmul.f32 %v590, %v537
        %v592 = vsub.f32 %v511, %v591
        %v593 = vsub.f32 %v514, %v591
        %v594 = vmul.f32 %v592, %v592
        %v595 = vmul.f32 %v593, %v593
        %v596 = vsel %vm519, %v594, 0.0
        %v597 = vrot.slane %v596, 4
        %v598 = vadd.f32 %v596, %v597
        %v599 = vrot.slane %v598, 2
        %v600 = vadd.f32 %v598, %v599
        %v601 = vrot.slane %v600, 1
        %v602 = vadd.f32 %v600, %v601
        %v603 = vsel %vm519, %v595, 0.0
        %v604 = vrot.slane %v603, 4
        %v605 = vadd.f32 %v603, %v604
        %v606 = vrot.slane %v605, 2
        %v607 = vadd.f32 %v605, %v606
        %v608 = vrot.slane %v607, 1
        %v609 = vadd.f32 %v607, %v608
        %v610 = vadd.f32 %v602, %v609
        %v611 = vmul.f32 %v610, 0.14285715
        %v612 = vadd.f32 %v611, 1e-05
        %v613 = vrsqrt.pop %v612
        %v614 = vmul.f32 %v612, %v613
        %vm615 = vcmp.eq.f32.partialorder %v612, inf
        %v616 = vsel %vm615, %v612, %v614
        %vm617 = vcmp.eq.f32.partialorder %v612, 0.0
        %v618 = vand.u32 %v612, 2147483648
        %v619 = vsel %vm617, %v618, %v616
        %v620 = vrcp.pop %v619
        %v621 = vmul.f32 %v592, %v620
        %v622 = vmul.f32 %v593, %v620
        %v623 = vmul.f32 %v621, %v515
        %v624 = vmul.f32 %v622, %v516
        %v625 = vadd.f32 %v623, %v517
        %v626 = vadd.f32 %v624, %v518
        %v627 = vadd.f32 %v572, %v625
        %v628 = vadd.f32 %v573, %v626
        %v629 = vxor.u32 %v627, 2147483648
        %v630 = vxor.u32 %v628, 2147483648
        %v631 = vmul.f32 %v629, 1.442695
        %v632 = vpow.pop %v631
        %v633 = vmul.f32 %v630, 1.442695
        %v634 = vpow.pop %v633
        %v635 = vadd.f32 %v632, 1.0
        %v636 = vadd.f32 %v634, 1.0
        %v637 = vrcp.pop %v635
        %v638 = vmul.f32 1.0, %v637
        %v639 = vrcp.pop %v636
        %v640 = vmul.f32 1.0, %v639
        %642 = vset.pattern.permute.xlu0 0
        %643 = vperm.xlu0 %642, %v638
        %v644 = vpop.permute.xlu0 %643
        %647 = vset.pattern.permute.xlu0 0
        %648 = vperm.xlu0 %647, %v640
        %v649 = vpop.permute.xlu0 %648
        %v651 = vmul.f32 %v499, %v644
        %v652 = vmul.f32 %v500, %v649
        %653 = vst.msk [vmem:[%s331] sm:$0xf] %vm381, %v651
        %654 = vst.msk [vmem:[%s331 + $0x4] sm:$0xf] %vm381, %v652
        %vm655 = vcmask 3072
        %656 = vst.msk [vmem:[%s376] sm:$0xf] %vm655, %v638
        %657 = vst.msk [vmem:[%s376 + $0x4] sm:$0xf] %vm655, %v640
        %s658 = sand.u32 %s179, 1
        %s659 = scalar_lea.sflag [#allocation3], %s658
        %s660 = sand.u32 %s179, 1
        %s661 = smul.addr %s660, 8
        %s662 = scalar_lea.vmem [#allocation2], %s661
        %s663 = smul.u32 %s26, 4
        %s664 = sadd.s32 %s663, %s25
        %p665 = scmp.lt.s32.totalorder %s664, 7
        %s666 = scalar_select %p665, %s664, 7
        %s667 = smul.addr %s666, 2
        %s668 = smul.addr %s667, 4
        %s669 = scalar_lea.vmem %s6, %s668
        // Predicated region
        $region41: #{tpu_custom_call.1} parent=39 // pred_check
          %p670 = pneg %p189
        $region42: #{tpu_custom_call.1} parent=39 // pred_check_branch
          %672 = sbr.rel (%p670) target = $region44
        $region43: #{tpu_custom_call.1} parent=39 // pred_region
          %s673 = smul.u32 %s26, 4
          %s674 = sadd.s32 %s673, %s25
          %s676 = ssub.s32 128, 128
          %677 = vsyncadd %s659, %s676
          %s678 = smul.addr %s674, 2
          %s679 = smul.addr %s678, 64
          %s680 = scalar_lea.hbm %s5, %s679
          %s681 = sshll.u32 %s662, 4
          %s682 = int_to_ptr.vmem [resolvable:$true] %s681
          %687 = dma.vmem_to_hbm [thread:$0]  %s682, 128, %s680, %s659, 64, 64, 4
        $region44: #{tpu_custom_call.1} parent=39 // pred_fallthru
          _
        // Predicated region
        $region45: #{tpu_custom_call.1} parent=39 // pred_check
          %p688 = pneg %p219
        $region46: #{tpu_custom_call.1} parent=39 // pred_check_branch
          %690 = sbr.rel (%p688) target = $region48
        $region47: #{tpu_custom_call.1} parent=39 // pred_region
          %s691 = smul.u32 %s26, 4
          %s692 = sadd.s32 %s691, %s25
        $region48: #{tpu_custom_call.1} parent=39 // pred_fallthru
          _
      $region40: #{tpu_custom_call.1} parent=5 // pred_fallthru
        _
      %p693 = scmp.le.s32.totalorder 2, %s16
      // Predicated region
      $region49: #{tpu_custom_call.1} parent=5 // pred_check
        %p694 = pneg %p693
      $region50: #{tpu_custom_call.1} parent=5 // pred_check_branch
        %696 = sbr.rel (%p694) target = $region52
      $region51: #{tpu_custom_call.1} parent=5 // pred_region
        %s697 = ssub.s32 %s16, 2
        // Predicated region
        $region53: #{tpu_custom_call.1} parent=51 // pred_check
          %p698 = pneg %p195
        $region54: #{tpu_custom_call.1} parent=51 // pred_check_branch
          %700 = sbr.rel (%p698) target = $region56
        $region55: #{tpu_custom_call.1} parent=51 // pred_region
          %s701 = sand.u32 %s180, 1
          %s702 = scalar_lea.sflag [#allocation3], %s701
          %s703 = sand.u32 %s180, 1
          %s704 = smul.addr %s703, 8
          %s705 = scalar_lea.vmem [#allocation2], %s704
          %706 = dma.done %s702, 128
        $region56: #{tpu_custom_call.1} parent=51 // pred_fallthru
          _
        // Predicated region
        $region57: #{tpu_custom_call.1} parent=51 // pred_check
          %p707 = pneg %p225
        $region58: #{tpu_custom_call.1} parent=51 // pred_check_branch
          %709 = sbr.rel (%p707) target = $region60
        $region59: #{tpu_custom_call.1} parent=51 // pred_region
          %s710 = smul.u32 %s28, 4
          %s711 = sadd.s32 %s710, %s27
          %p712 = scmp.lt.s32.totalorder %s711, 7
          %s713 = scalar_select %p712, %s711, 7
          %s714 = smul.addr %s713, 2
          %s715 = smul.addr %s714, 4
          %s716 = scalar_lea.vmem %s6, %s715
        $region60: #{tpu_custom_call.1} parent=51 // pred_fallthru
          _
      $region52: #{tpu_custom_call.1} parent=5 // pred_fallthru
        _
    $region6: #{tpu_custom_call.1} parent=1 // loop_footer
      %s20 = sadd.s32 1, %s16
    $region7: #{tpu_custom_call.1} parent=1 // loop_footer_branch
      %15 = sbr.rel target = $region3
    $region8: #{tpu_custom_call.1} parent=1 // loop_exit
      _
    %717 = vsyncpa [#allocation3], 1
    %s718 = scalar_lea.sflag [#allocation3], 1
    %719 = vsyncpa %s718, 1

</llo_original>
